<compile_context>
chip_gen: v7x
topology: tpu7x:2x2x1
jax: 0.10.0
libtpu: 0.0.40
codegen_flags: <defaults>
</compile_context>

<pallas_src>
import functools

import jax
import jax.numpy as jnp
from jax.experimental import pallas as pl
from jax.experimental.pallas import tpu as pltpu


_INV_SQRT2 = 0.7071067811865476


def _gelu_f32(h, approximate):
    if approximate:
        # tanh form -> EUP slot (effectively free next to the MXU on v6e/v7x).
        return jax.nn.gelu(h, approximate=True)
    # Exact erf form: matches torch.nn.GELU() default.
    return 0.5 * h * (1.0 + jax.lax.erf(h * _INV_SQRT2))


def _mlp_fused_kernel(x_ref, w1_ref, b1_ref, w2_ref, b2_ref, o_ref, *, gelu_approx):
    """Fast path: full hidden dim resident in VMEM, no accumulator scratch."""
    h = jnp.dot(x_ref[...], w1_ref[...], preferred_element_type=jnp.float32)
    h = h + b1_ref[...].astype(jnp.float32)
    h = _gelu_f32(h, gelu_approx)
    # Dropout with p=0.0 is the identity (eval semantics) -> nothing to do.
    # TODO(synk): training-mode dropout (p>0) would need pltpu.prng_* masking.
    out = jnp.dot(h.astype(w2_ref.dtype), w2_ref[...],
                  preferred_element_type=jnp.float32)
    o_ref[...] = (out + b2_ref[...].astype(jnp.float32)).astype(o_ref.dtype)


def _mlp_htiled_kernel(x_ref, w1_ref, b1_ref, w2_ref, b2_ref, o_ref, acc_ref,
                       *, gelu_approx):
    """H-reduction path for weights that don't fit in VMEM (f32 accumulator)."""
    k = pl.program_id(1)
    nk = pl.num_programs(1)

    @pl.when(k == 0)
    def _():
        # Fold the fc2 bias into the accumulator init (saves an epilogue add).
        acc_ref[...] = jnp.broadcast_to(b2_ref[...].astype(jnp.float32),
                                        acc_ref.shape)

    h = jnp.dot(x_ref[...], w1_ref[...], preferred_element_type=jnp.float32)
    h = h + b1_ref[...].astype(jnp.float32)
    h = _gelu_f32(h, gelu_approx)
    acc_ref[...] += jnp.dot(h.astype(w2_ref.dtype), w2_ref[...],
                            preferred_element_type=jnp.float32)

    @pl.when(k == nk - 1)
    def _():
        o_ref[...] = acc_ref[...].astype(o_ref.dtype)


@functools.lru_cache(maxsize=1)
def _vmem_budget_bytes():
    """Generation-aware VMEM budget (capacity minus Mosaic scratch headroom)."""
    cap = None
    try:
        cap = getattr(pltpu.get_tpu_info(), "vmem_capacity_bytes", None)
    except Exception:
        cap = None
    if not cap or cap <= 0:
        return 56 * 1024 * 1024          # conservative default, fits v7x (64 MiB/TC)
    headroom = 8 * 1024 * 1024 if cap <= 64 * 1024 * 1024 else 16 * 1024 * 1024
    return int(cap - headroom)


def _pick_tiling(Din, H, Dout, x_isz, w_isz, budget, block_rows, block_h):
    """Choose (block_rows, block_h, resident_bytes) that fit the VMEM budget."""
    def resident(br, bh):
        nk = H // bh
        nbuf_w = 1 if nk == 1 else 2     # weight chunks re-stream only when H is tiled
        return (2 * br * Din * x_isz                      # x tile (double buffered)
                + 2 * br * Dout * x_isz                   # out tile (double buffered)
                + nbuf_w * (Din * bh + bh) * w_isz        # w1 + b1 chunks
                + nbuf_w * bh * Dout * w_isz              # w2 chunk
                + Dout * w_isz                            # b2 (always single buffered)
                + (0 if nk == 1 else br * Dout * 4)       # f32 accumulator scratch
                + 2 * br * bh * 4)                        # f32 activation temporaries

    if block_h is not None:
        h_candidates = [block_h]
    else:
        # Full H (weights resident, fast path) first, then 128-aligned divisors.
        h_candidates = [H] + sorted(
            (c for c in range(128, H, 128) if H % c == 0), reverse=True)

    for bh in h_candidates:
        if block_rows is not None:
            row_candidates = [block_rows]
        elif H // bh == 1:
            row_candidates = [256]
        else:
            row_candidates = [512, 256]  # bigger rows amortize re-streamed weights
        for br in row_candidates:
            if resident(br, bh) <= budget:
                return br, bh, resident(br, bh)

    bh = h_candidates[-1]
    br = block_rows if block_rows is not None else 256
    return br, bh, resident(br, bh)


@functools.partial(jax.jit, static_argnames=("block_rows", "block_h", "gelu_approx"))
def mlp_forward(x, w1, b1, w2, b2, *, block_rows=None, block_h=None,
                gelu_approx=False):
    """ViT MLP forward: fc2(GELU(fc1(x))); dropout p=0.0 is the identity.

    x: (B, N, Din); w1: (Din, H); b1: (H,); w2: (H, Dout); b2: (Dout,).
    On v5e the intended fast path is bf16 storage (f32 accumulation is kept);
    f32 storage is the accuracy/debug path.
    """
    B, N, Din = x.shape
    H = w1.shape[1]
    Dout = w2.shape[1]

    if block_rows is not None:
        assert block_rows % 16 == 0, "block_rows must be a multiple of 16"
    if block_h is not None:
        assert H % block_h == 0, "block_h must evenly divide the hidden dim"
        assert block_h == H or block_h % 128 == 0, "block_h must be 128-aligned"

    x_isz = jnp.dtype(x.dtype).itemsize
    w_isz = jnp.dtype(w1.dtype).itemsize
    budget = _vmem_budget_bytes()

    br, bh, resident = _pick_tiling(Din, H, Dout, x_isz, w_isz, budget,
                                    block_rows, block_h)
    nk = H // bh

    M = B * N
    # Guarantee >=2 row blocks when M allows it so the "parallel" row axis can
    # actually shard across both v7x TensorCores.
    if block_rows is None:
        while -(-M // br) < 2 and br > 128:
            br //= 2

    num_row_blocks = -(-M // br)
    M_pad = num_row_blocks * br

    x2d = x.reshape(M, Din)
    if M_pad != M:
        x2d = jnp.pad(x2d, ((0, M_pad - M), (0, 0)))

    b1_2d = b1.reshape(1, H)
    b2_2d = b2.reshape(1, Dout)

    vmem_limit = int(min(budget, max(2 * resident, 32 * 1024 * 1024)))

    weight_bytes = (Din * H + H + H * Dout + Dout) * w_isz
    cost = pl.CostEstimate(
        flops=2 * M * H * (Din + Dout),
        transcendentals=M * H,
        bytes_accessed=int(M_pad * (Din + Dout) * x_isz
                           + (1 if nk == 1 else num_row_blocks) * weight_bytes),
    )

    single = pl.Buffered(1)   # grid-invariant blocks: single VMEM buffer

    if nk == 1:
        kernel = functools.partial(_mlp_fused_kernel, gelu_approx=gelu_approx)
        grid_spec = pltpu.PrefetchScalarGridSpec(
            num_scalar_prefetch=0,
            grid=(num_row_blocks,),
            in_specs=[
                pl.BlockSpec((br, Din), lambda i: (i, 0)),                       # x rows
                pl.BlockSpec((Din, H), lambda i: (0, 0), pipeline_mode=single),  # w1
                pl.BlockSpec((1, H), lambda i: (0, 0), pipeline_mode=single),    # b1
                pl.BlockSpec((H, Dout), lambda i: (0, 0), pipeline_mode=single), # w2
                pl.BlockSpec((1, Dout), lambda i: (0, 0), pipeline_mode=single), # b2
            ],
            out_specs=pl.BlockSpec((br, Dout), lambda i: (i, 0)),
            scratch_shapes=[],
        )
        dims = ("parallel",)
    else:
        kernel = functools.partial(_mlp_htiled_kernel, gelu_approx=gelu_approx)
        grid_spec = pltpu.PrefetchScalarGridSpec(
            num_scalar_prefetch=0,
            grid=(num_row_blocks, nk),          # rows parallel, H-reduction innermost
            in_specs=[
                pl.BlockSpec((br, Din), lambda i, k: (i, 0)),                       # x rows
                pl.BlockSpec((Din, bh), lambda i, k: (0, k)),                       # w1 chunk
                pl.BlockSpec((1, bh), lambda i, k: (0, k)),                         # b1 chunk
                pl.BlockSpec((bh, Dout), lambda i, k: (k, 0)),                      # w2 chunk
                pl.BlockSpec((1, Dout), lambda i, k: (0, 0), pipeline_mode=single), # b2
            ],
            out_specs=pl.BlockSpec((br, Dout), lambda i, k: (i, 0)),
            scratch_shapes=[pltpu.VMEM((br, Dout), jnp.float32)],
        )
        dims = ("parallel", "arbitrary")

    out2d = pl.pallas_call(
        kernel,
        out_shape=jax.ShapeDtypeStruct((M_pad, Dout), x.dtype),
        grid_spec=grid_spec,
        compiler_params=pltpu.CompilerParams(
            dimension_semantics=dims,
            vmem_limit_bytes=vmem_limit,
        ),
        cost_estimate=cost,
    )(x2d, w1, b1_2d, w2, b2_2d)

    return out2d[:M].reshape(B, N, Dout)


def init_params(key, in_features, hidden_features, out_features, dtype=jnp.float32):
    """Deterministic synthetic params (PyTorch Linear shapes, stored transposed)."""
    k1, k2, k3, k4 = jax.random.split(key, 4)
    # PyTorch Linear weight is (out, in); store as (in, out) for the kernel.
    w1 = jax.random.normal(k1, (in_features, hidden_features), dtype) * 0.02
    b1 = jax.random.normal(k2, (hidden_features,), dtype) * 0.02
    w2 = jax.random.normal(k3, (hidden_features, out_features), dtype) * 0.02
    b2 = jax.random.normal(k4, (out_features,), dtype) * 0.02
    return w1, b1, w2, b2


if __name__ == "__main__":
    key = jax.random.PRNGKey(0)
    kx, kp = jax.random.split(key)

    # Small but TPU-friendly shapes: lane-dense (multiple-of-128) feature dims and
    # a ViT-like ragged token count (197) to exercise the row-padding path.
    B, N = 2, 197
    Din, H, Dout = 128, 256, 128

    x = jax.random.normal(kx, (B, N, Din), jnp.float32)
    w1, b1, w2, b2 = init_params(kp, Din, H, Dout, dtype=jnp.float32)

    # Pure-JAX reference (exact erf GELU, matching torch.nn.GELU() default).
    h_ref = x @ w1 + b1
    h_ref = 0.5 * h_ref * (1.0 + jax.lax.erf(h_ref * _INV_SQRT2))
    ref = h_ref @ w2 + b2

    # 1) Default path: full-H fast path (no accumulator scratch), exact GELU, f32.
    out = jax.block_until_ready(mlp_forward(x, w1, b1, w2, b2))
    assert out.shape == (B, N, Dout)
    assert jnp.allclose(out, ref, atol=1e-4, rtol=1e-4), \
        float(jnp.max(jnp.abs(out - ref)))

    # 2) Forced H-tiled path (exercise the accumulator kernel + b2 fold).
    out_t = jax.block_until_ready(
        mlp_forward(x, w1, b1, w2, b2, block_rows=256, block_h=128))
    assert jnp.allclose(out_t, ref, atol=1e-4, rtol=1e-4), \
        float(jnp.max(jnp.abs(out_t - ref)))

    # 3) Tanh (EUP) GELU path; close to the erf form at these magnitudes.
    out_a = jax.block_until_ready(
        mlp_forward(x, w1, b1, w2, b2, gelu_approx=True))
    assert float(jnp.max(jnp.abs(out_a - ref))) < 1e-2

    # 4) bf16 storage (the intended fast path, esp. v5e): MXU at the bf16 rate,
    #    f32 accumulation, activation math still in f32.
    xb = x.astype(jnp.bfloat16)
    w1b, b1b, w2b, b2b = (a.astype(jnp.bfloat16) for a in (w1, b1, w2, b2))
    out_b = jax.block_until_ready(mlp_forward(xb, w1b, b1b, w2b, b2b))
    assert float(jnp.max(jnp.abs(out_b.astype(jnp.float32) - ref))) < 5e-2

    print("KERNEL_OK")
</pallas_src>

<mosaic_0001>
module attributes {stable_mosaic.version = 11 : i64} {
  func.func @_mlp_fused_kernel(%arg0: i32, %arg1: memref<256x128xf32, #tpu.memory_space<vmem>>, %arg2: memref<128x256xf32, #tpu.memory_space<vmem>>, %arg3: memref<1x256xf32, #tpu.memory_space<vmem>>, %arg4: memref<256x128xf32, #tpu.memory_space<vmem>>, %arg5: memref<1x128xf32, #tpu.memory_space<vmem>>, %arg6: memref<256x128xf32, #tpu.memory_space<vmem>>) attributes {dimension_semantics = [#tpu.dimension_semantics<parallel>], iteration_bounds = array<i64: 2>, scalar_prefetch = 0 : i64, scratch_operands = 0 : i64, tpu.core_type = #tpu.core_type<tc>, window_params = [{transform_indices = @transform_0, window_bounds = array<i64: 256, 128>}, {pipeline_mode = #tpu.pipeline_mode<synchronous>, transform_indices = @transform_1, window_bounds = array<i64: 128, 256>}, {pipeline_mode = #tpu.pipeline_mode<synchronous>, transform_indices = @transform_2, window_bounds = array<i64: 1, 256>}, {pipeline_mode = #tpu.pipeline_mode<synchronous>, transform_indices = @transform_3, window_bounds = array<i64: 256, 128>}, {pipeline_mode = #tpu.pipeline_mode<synchronous>, transform_indices = @transform_4, window_bounds = array<i64: 1, 128>}, {transform_indices = @transform_5, window_bounds = array<i64: 256, 128>}]} {
    %c0 = arith.constant 0 : index
    %c0_0 = arith.constant 0 : index
    %0 = vector.load %arg1[%c0, %c0_0] : memref<256x128xf32, #tpu.memory_space<vmem>>, vector<256x128xf32>
    %c0_1 = arith.constant 0 : index
    %c0_2 = arith.constant 0 : index
    %1 = vector.load %arg2[%c0_1, %c0_2] : memref<128x256xf32, #tpu.memory_space<vmem>>, vector<128x256xf32>
    %cst = arith.constant dense<0.000000e+00> : vector<256x256xf32>
    %2 = tpu.matmul %0, %1, %cst {dimension_numbers = #tpu.dot_dimension_numbers<[1], [0], [0], [1], [0, 0, 1, 1], [], []>} : vector<256x128xf32>, vector<128x256xf32>, vector<256x256xf32> -> vector<256x256xf32>
    %c0_3 = arith.constant 0 : index
    %c0_4 = arith.constant 0 : index
    %3 = vector.load %arg3[%c0_3, %c0_4] : memref<1x256xf32, #tpu.memory_space<vmem>>, vector<1x256xf32>
    %4 = vector.broadcast %3 : vector<1x256xf32> to vector<256x256xf32>
    %5 = arith.addf %2, %4 : vector<256x256xf32>
    %cst_5 = arith.constant 5.000000e-01 : f32
    %6 = vector.broadcast %cst_5 : f32 to vector<256x256xf32>
    %7 = arith.mulf %6, %5 : vector<256x256xf32>
    %cst_6 = arith.constant 0.707106769 : f32
    %8 = vector.broadcast %cst_6 : f32 to vector<256x256xf32>
    %9 = arith.mulf %5, %8 : vector<256x256xf32>
    %10 = math.erf %9 : vector<256x256xf32>
    %cst_7 = arith.constant 1.000000e+00 : f32
    %11 = vector.broadcast %cst_7 : f32 to vector<256x256xf32>
    %12 = arith.addf %11, %10 : vector<256x256xf32>
    %13 = arith.mulf %7, %12 : vector<256x256xf32>
    %c0_8 = arith.constant 0 : index
    %c0_9 = arith.constant 0 : index
    %14 = vector.load %arg4[%c0_8, %c0_9] : memref<256x128xf32, #tpu.memory_space<vmem>>, vector<256x128xf32>
    %cst_10 = arith.constant dense<0.000000e+00> : vector<256x128xf32>
    %15 = tpu.matmul %13, %14, %cst_10 {dimension_numbers = #tpu.dot_dimension_numbers<[1], [0], [0], [1], [0, 0, 1, 1], [], []>} : vector<256x256xf32>, vector<256x128xf32>, vector<256x128xf32> -> vector<256x128xf32>
    %c0_11 = arith.constant 0 : index
    %c0_12 = arith.constant 0 : index
    %16 = vector.load %arg5[%c0_11, %c0_12] : memref<1x128xf32, #tpu.memory_space<vmem>>, vector<1x128xf32>
    %17 = vector.broadcast %16 : vector<1x128xf32> to vector<256x128xf32>
    %18 = arith.addf %15, %17 : vector<256x128xf32>
    %c0_13 = arith.constant 0 : index
    %c0_14 = arith.constant 0 : index
    %19 = vector.load %arg6[%c0_13, %c0_14] : memref<256x128xf32, #tpu.memory_space<vmem>>, vector<256x128xf32>
    tpu.vector_store %arg6[%c0_13, %c0_14], %18 {strides = array<i32>} : memref<256x128xf32, #tpu.memory_space<vmem>>, vector<256x128xf32>,
    return
  }
  func.func @transform_0(%arg0: i32) -> (i32, i32) {
    %c0_i32 = arith.constant 0 : i32
    %c0_i32_0 = arith.constant 0 : i32
    return %arg0, %c0_i32 : i32, i32
  }
  func.func @transform_1(%arg0: i32) -> (i32, i32) {
    %c0_i32 = arith.constant 0 : i32
    %c0_i32_0 = arith.constant 0 : i32
    %c0_i32_1 = arith.constant 0 : i32
    return %c0_i32, %c0_i32_0 : i32, i32
  }
  func.func @transform_2(%arg0: i32) -> (i32, i32) {
    %c0_i32 = arith.constant 0 : i32
    %c0_i32_0 = arith.constant 0 : i32
    %c0_i32_1 = arith.constant 0 : i32
    return %c0_i32, %c0_i32_0 : i32, i32
  }
  func.func @transform_3(%arg0: i32) -> (i32, i32) {
    %c0_i32 = arith.constant 0 : i32
    %c0_i32_0 = arith.constant 0 : i32
    %c0_i32_1 = arith.constant 0 : i32
    return %c0_i32, %c0_i32_0 : i32, i32
  }
  func.func @transform_4(%arg0: i32) -> (i32, i32) {
    %c0_i32 = arith.constant 0 : i32
    %c0_i32_0 = arith.constant 0 : i32
    %c0_i32_1 = arith.constant 0 : i32
    return %c0_i32, %c0_i32_0 : i32, i32
  }
  func.func @transform_5(%arg0: i32) -> (i32, i32) {
    %c0_i32 = arith.constant 0 : i32
    %c0_i32_0 = arith.constant 0 : i32
    return %arg0, %c0_i32 : i32, i32
  }
}

</mosaic_0001>

<llo_original>
// kernel: mlp_forward.1
$region0: #{mlp_forward.1}
  #allocation0 [shape = 'u32[]', space=smem, size = 0x4, offset = 0x4, fixed_abs, tag = 'smem constant byte address 0x4 - core index']
  #allocation1 [shape = 'u32[144,128]{1,0:T(1,128)}', space=vmem, size = 0x12000, scoped, tag = 'internal scratch']
  %s0 = inlined_call_operand.vmem [shape: f32[512,128], index: 0, kind: input, shape index: {}]
  %s1 = inlined_call_operand.vmem [shape: f32[128,256], index: 1, kind: input, shape index: {}]
  %s2 = inlined_call_operand.vmem [shape: f32[1,256], index: 2, kind: input, shape index: {}]
  %s3 = inlined_call_operand.vmem [shape: f32[256,128], index: 3, kind: input, shape index: {}]
  %s4 = inlined_call_operand.vmem [shape: f32[1,128], index: 4, kind: input, shape index: {}]
  %s5 = inlined_call_operand.vmem [shape: f32[512,128], index: 5, kind: output, shape index: {}]
  %s6 = sld [smem:[#allocation0]]
  $region53: #{mlp_forward.1} parent=0
    _
  %s8 = ssub.s32 1, %s6
  %s9 = scalar_select 0, %s8, %s6
  loop: start=0, step=1, limit=4
  $region2: #{mlp_forward.1} parent=0 // loop_pre_header
    _
  $region3: #{mlp_forward.1} parent=0 // loop_header
    %s11 = sphi 0, %s15
    %p12 = scmp.ge.s32.totalorder %s11, 4
    %s21 = sphi 0, %s23
    %s24 = sphi 0, %s21
    %s25 = sphi 0, %s24
    %s41 = sphi 0, %s25
    %s45 = sphi 0, %s45
    %s47 = sphi 0, %s45
    %s48 = sphi 0, %s47
    %s62 = sphi 0, %s48
    %s66 = sphi 0, %s66
    %s68 = sphi 0, %s66
    %s69 = sphi 0, %s68
    %s83 = sphi 0, %s69
    %s87 = sphi 0, %s87
    %s89 = sphi 0, %s87
    %s90 = sphi 0, %s89
    %s104 = sphi 0, %s90
    %s108 = sphi 0, %s108
    %s110 = sphi 0, %s108
    %s111 = sphi 0, %s110
    %s125 = sphi 0, %s111
    %s131 = sphi 0, %s133
    %s134 = sphi 0, %s131
    %s135 = sphi 0, %s134
    %s151 = sphi 0, %s135
  $region4: #{mlp_forward.1} parent=0 // loop_header_branch
    %14 = sbr.rel (%p12) target = $region8
  $region5: #{mlp_forward.1} parent=0 // loop_body
    %s16 = ssub.s32 %s11, 1
    %s17 = ssub.s32 %s11, 2
    %s18 = sadd.s32 %s11, 1
    %s19 = ssub.s32 %s11, %s18
    %p20 = scmp.eq.s32.totalorder %s19, 0
    %s22 = sadd.s32 %s21, 1
    %s23 = scalar_select %p20, %s21, %s22
    %p26 = pneg %p20
    %p27 = scmp.eq.s32.totalorder %s11, 1
    %p28 = por %p26, %p27
    %p29 = scmp.ne.s32.totalorder %s21, %s24
    %p30 = scmp.eq.s32.totalorder %s11, 0
    %p31 = por %p29, %p30
    %p32 = scmp.ne.s32.totalorder %s21, %s24
    %p33 = scmp.eq.s32.totalorder %s16, 1
    %p34 = por %p32, %p33
    %p35 = scmp.ne.s32.totalorder %s24, %s25
    %p36 = scmp.eq.s32.totalorder %s16, 0
    %p37 = por %p35, %p36
    %p38 = scmp.ne.s32.totalorder %s24, %s25
    %p39 = scmp.eq.s32.totalorder %s17, 1
    %p40 = por %p38, %p39
    %p42 = scmp.ne.s32.totalorder %s25, %s41
    %p43 = scmp.eq.s32.totalorder %s17, 0
    %p44 = por %p42, %p43
    %s46 = sadd.s32 %s45, 1
    %p49 = scmp.eq.s32.totalorder %s11, 1
    %p50 = scmp.ne.s32.totalorder %s45, %s47
    %p51 = scmp.eq.s32.totalorder %s11, 0
    %p52 = por %p50, %p51
    %p53 = scmp.ne.s32.totalorder %s45, %s47
    %p54 = scmp.eq.s32.totalorder %s16, 1
    %p55 = por %p53, %p54
    %p56 = scmp.ne.s32.totalorder %s47, %s48
    %p57 = scmp.eq.s32.totalorder %s16, 0
    %p58 = por %p56, %p57
    %p59 = scmp.ne.s32.totalorder %s47, %s48
    %p60 = scmp.eq.s32.totalorder %s17, 1
    %p61 = por %p59, %p60
    %p63 = scmp.ne.s32.totalorder %s48, %s62
    %p64 = scmp.eq.s32.totalorder %s17, 0
    %p65 = por %p63, %p64
    %s67 = sadd.s32 %s66, 1
    %p70 = scmp.eq.s32.totalorder %s11, 1
    %p71 = scmp.ne.s32.totalorder %s66, %s68
    %p72 = scmp.eq.s32.totalorder %s11, 0
    %p73 = por %p71, %p72
    %p74 = scmp.ne.s32.totalorder %s66, %s68
    %p75 = scmp.eq.s32.totalorder %s16, 1
    %p76 = por %p74, %p75
    %p77 = scmp.ne.s32.totalorder %s68, %s69
    %p78 = scmp.eq.s32.totalorder %s16, 0
    %p79 = por %p77, %p78
    %p80 = scmp.ne.s32.totalorder %s68, %s69
    %p81 = scmp.eq.s32.totalorder %s17, 1
    %p82 = por %p80, %p81
    %p84 = scmp.ne.s32.totalorder %s69, %s83
    %p85 = scmp.eq.s32.totalorder %s17, 0
    %p86 = por %p84, %p85
    %s88 = sadd.s32 %s87, 1
    %p91 = scmp.eq.s32.totalorder %s11, 1
    %p92 = scmp.ne.s32.totalorder %s87, %s89
    %p93 = scmp.eq.s32.totalorder %s11, 0
    %p94 = por %p92, %p93
    %p95 = scmp.ne.s32.totalorder %s87, %s89
    %p96 = scmp.eq.s32.totalorder %s16, 1
    %p97 = por %p95, %p96
    %p98 = scmp.ne.s32.totalorder %s89, %s90
    %p99 = scmp.eq.s32.totalorder %s16, 0
    %p100 = por %p98, %p99
    %p101 = scmp.ne.s32.totalorder %s89, %s90
    %p102 = scmp.eq.s32.totalorder %s17, 1
    %p103 = por %p101, %p102
    %p105 = scmp.ne.s32.totalorder %s90, %s104
    %p106 = scmp.eq.s32.totalorder %s17, 0
    %p107 = por %p105, %p106
    %s109 = sadd.s32 %s108, 1
    %p112 = scmp.eq.s32.totalorder %s11, 1
    %p113 = scmp.ne.s32.totalorder %s108, %s110
    %p114 = scmp.eq.s32.totalorder %s11, 0
    %p115 = por %p113, %p114
    %p116 = scmp.ne.s32.totalorder %s108, %s110
    %p117 = scmp.eq.s32.totalorder %s16, 1
    %p118 = por %p116, %p117
    %p119 = scmp.ne.s32.totalorder %s110, %s111
    %p120 = scmp.eq.s32.totalorder %s16, 0
    %p121 = por %p119, %p120
    %p122 = scmp.ne.s32.totalorder %s110, %s111
    %p123 = scmp.eq.s32.totalorder %s17, 1
    %p124 = por %p122, %p123
    %p126 = scmp.ne.s32.totalorder %s111, %s125
    %p127 = scmp.eq.s32.totalorder %s17, 0
    %p128 = por %p126, %p127
    %s129 = ssub.s32 %s11, %s18
    %p130 = scmp.eq.s32.totalorder %s129, 0
    %s132 = sadd.s32 %s131, 1
    %s133 = scalar_select %p130, %s131, %s132
    %p136 = pneg %p130
    %p137 = scmp.eq.s32.totalorder %s11, 1
    %p138 = por %p136, %p137
    %p139 = scmp.ne.s32.totalorder %s131, %s134
    %p140 = scmp.eq.s32.totalorder %s11, 0
    %p141 = por %p139, %p140
    %p142 = scmp.ne.s32.totalorder %s131, %s134
    %p143 = scmp.eq.s32.totalorder %s16, 1
    %p144 = por %p142, %p143
    %p145 = scmp.ne.s32.totalorder %s134, %s135
    %p146 = scmp.eq.s32.totalorder %s16, 0
    %p147 = por %p145, %p146
    %p148 = scmp.ne.s32.totalorder %s134, %s135
    %p149 = scmp.eq.s32.totalorder %s17, 1
    %p150 = por %p148, %p149
    %p152 = scmp.ne.s32.totalorder %s135, %s151
    %p153 = scmp.eq.s32.totalorder %s17, 0
    %p154 = por %p152, %p153
    %p155 = scmp.le.s32.totalorder 1, %s11
    %p156 = scmp.lt.s32.totalorder %s11, 3
    %p157 = pnand %p155, %p156
    %p158 = pneg %p157
    // Predicated region
    $region9: #{mlp_forward.1} parent=5 // pred_check
      _
    $region10: #{mlp_forward.1} parent=5 // pred_check_branch
      %160 = sbr.rel (%p157) target = $region12
    $region11: #{mlp_forward.1} parent=5 // pred_region
      %s161 = ssub.s32 %s11, 1
      // Predicated region
      $region13: #{mlp_forward.1} parent=11 // pred_check
        %p162 = pneg %p58
      $region14: #{mlp_forward.1} parent=11 // pred_check_branch
        %164 = sbr.rel (%p162) target = $region16
      $region15: #{mlp_forward.1} parent=11 // pred_region
        _
      $region16: #{mlp_forward.1} parent=11 // pred_fallthru
        _
      // Predicated region
      $region17: #{mlp_forward.1} parent=11 // pred_check
        %p165 = pneg %p79
      $region18: #{mlp_forward.1} parent=11 // pred_check_branch
        %167 = sbr.rel (%p165) target = $region20
      $region19: #{mlp_forward.1} parent=11 // pred_region
        _
      $region20: #{mlp_forward.1} parent=11 // pred_fallthru
        _
      // Predicated region
      $region21: #{mlp_forward.1} parent=11 // pred_check
        %p168 = pneg %p100
      $region22: #{mlp_forward.1} parent=11 // pred_check_branch
        %170 = sbr.rel (%p168) target = $region24
      $region23: #{mlp_forward.1} parent=11 // pred_region
        _
      $region24: #{mlp_forward.1} parent=11 // pred_fallthru
        _
      // Predicated region
      $region25: #{mlp_forward.1} parent=11 // pred_check
        %p171 = pneg %p121
      $region26: #{mlp_forward.1} parent=11 // pred_check_branch
        %173 = sbr.rel (%p171) target = $region28
      $region27: #{mlp_forward.1} parent=11 // pred_region
        _
      $region28: #{mlp_forward.1} parent=11 // pred_fallthru
        _
    $region12: #{mlp_forward.1} parent=5 // pred_fallthru
      _
    %p174 = scmp.lt.s32.totalorder %s11, 2
    // Predicated region
    $region29: #{mlp_forward.1} parent=5 // pred_check
      %p175 = pneg %p174
    $region30: #{mlp_forward.1} parent=5 // pred_check_branch
      %177 = sbr.rel (%p175) target = $region32
    $region31: #{mlp_forward.1} parent=5 // pred_region
      // Predicated region
      $region33: #{mlp_forward.1} parent=31 // pred_check
        %p178 = pneg %p31
      $region34: #{mlp_forward.1} parent=31 // pred_check_branch
        %180 = sbr.rel (%p178) target = $region36
      $region35: #{mlp_forward.1} parent=31 // pred_region
        %s181 = smul.u32 32, %s11
        %p182 = scmp.lt.s32.totalorder %s181, 63
        %s183 = scalar_select %p182, %s181, 63
        %s184 = smul.addr %s183, 8
        %s185 = scalar_lea.vmem %s0, %s184
        %s186 = smul.u32 32, %s11
      $region36: #{mlp_forward.1} parent=31 // pred_fallthru
        _
    $region32: #{mlp_forward.1} parent=5 // pred_fallthru
      _
    %p187 = scmp.le.s32.totalorder 1, %s11
    %p188 = scmp.lt.s32.totalorder %s11, 3
    %p189 = pnand %p187, %p188
    %p190 = pneg %p189
    // Predicated region
    $region37: #{mlp_forward.1} parent=5 // pred_check
      _
    $region38: #{mlp_forward.1} parent=5 // pred_check_branch
      %192 = sbr.rel (%p189) target = $region40
    $region39: #{mlp_forward.1} parent=5 // pred_region
      %s193 = ssub.s32 %s11, 1
      %s194 = smul.u32 32, %s16
      %p195 = scmp.lt.s32.totalorder %s194, 63
      %s196 = scalar_select %p195, %s194, 63
      %s197 = smul.addr %s196, 8
      %s198 = scalar_lea.vmem %s0, %s197
      %p199 = pneg %p37
      %p200 = pneg %p34
      %p201 = pneg %p58
      %p202 = pneg %p55
      %p203 = pneg %p79
      %p204 = pneg %p76
      %p205 = pneg %p100
      %p206 = pneg %p97
      %p207 = pneg %p121
      %p208 = pneg %p118
      %p209 = pneg %p147
      %p210 = pneg %p144
      %s211 = smul.u32 32, %s16
      %p212 = scmp.lt.s32.totalorder %s211, 63
      %s213 = scalar_select %p212, %s211, 63
      %s214 = smul.addr %s213, 8
      %s215 = scalar_lea.vmem %s5, %s214
      %s216 = smul.u32 32, %s16
      %p217 = scmp.lt.s32.totalorder %s216, 63
      %s218 = scalar_select %p217, %s216, 63
      %s219 = smul.addr %s218, 8
      %s220 = scalar_lea.vmem %s0, %s219
      %s221 = smul.u32 32, %s16
      %s222 = smul.u32 32, %s16
      %p223 = scmp.lt.s32.totalorder %s222, 63
      %s224 = scalar_select %p223, %s222, 63
      %s225 = smul.addr %s224, 8
      %s226 = scalar_lea.vmem %s5, %s225
      %s227 = smul.u32 32, %s16
      %v228 = vld [vmem:[%s220] sm:$0xff]
      %v229 = vld [vmem:[%s220 + $0x8] sm:$0xff]
      %v230 = vld [vmem:[%s220 + $0x10] sm:$0xff]
      %v231 = vld [vmem:[%s220 + $0x18] sm:$0xff]
      %v232 = vld [vmem:[%s220 + $0x20] sm:$0xff]
      %v233 = vld [vmem:[%s220 + $0x28] sm:$0xff]
      %v234 = vld [vmem:[%s220 + $0x30] sm:$0xff]
      %v235 = vld [vmem:[%s220 + $0x38] sm:$0xff]
      %v236 = vld [vmem:[%s220 + $0x40] sm:$0xff]
      %v237 = vld [vmem:[%s220 + $0x48] sm:$0xff]
      %v238 = vld [vmem:[%s220 + $0x50] sm:$0xff]
      %v239 = vld [vmem:[%s220 + $0x58] sm:$0xff]
      %v240 = vld [vmem:[%s220 + $0x60] sm:$0xff]
      %v241 = vld [vmem:[%s220 + $0x68] sm:$0xff]
      %v242 = vld [vmem:[%s220 + $0x70] sm:$0xff]
      %v243 = vld [vmem:[%s220 + $0x78] sm:$0xff]
      %v244 = vld [vmem:[%s220 + $0x80] sm:$0xff]
      %v245 = vld [vmem:[%s220 + $0x88] sm:$0xff]
      %v246 = vld [vmem:[%s220 + $0x90] sm:$0xff]
      %v247 = vld [vmem:[%s220 + $0x98] sm:$0xff]
      %v248 = vld [vmem:[%s220 + $0xa0] sm:$0xff]
      %v249 = vld [vmem:[%s220 + $0xa8] sm:$0xff]
      %v250 = vld [vmem:[%s220 + $0xb0] sm:$0xff]
      %v251 = vld [vmem:[%s220 + $0xb8] sm:$0xff]
      %v252 = vld [vmem:[%s220 + $0xc0] sm:$0xff]
      %v253 = vld [vmem:[%s220 + $0xc8] sm:$0xff]
      %v254 = vld [vmem:[%s220 + $0xd0] sm:$0xff]
      %v255 = vld [vmem:[%s220 + $0xd8] sm:$0xff]
      %v256 = vld [vmem:[%s220 + $0xe0] sm:$0xff]
      %v257 = vld [vmem:[%s220 + $0xe8] sm:$0xff]
      %v258 = vld [vmem:[%s220 + $0xf0] sm:$0xff]
      %v259 = vld [vmem:[%s220 + $0xf8] sm:$0xff]
      %v260 = vld [vmem:[%s1] sm:$0xff]
      %v261 = vld [vmem:[%s1 + $0x8] sm:$0xff]
      %v262 = vld [vmem:[%s1 + $0x10] sm:$0xff]
      %v263 = vld [vmem:[%s1 + $0x18] sm:$0xff]
      %v264 = vld [vmem:[%s1 + $0x20] sm:$0xff]
      %v265 = vld [vmem:[%s1 + $0x28] sm:$0xff]
      %v266 = vld [vmem:[%s1 + $0x30] sm:$0xff]
      %v267 = vld [vmem:[%s1 + $0x38] sm:$0xff]
      %v268 = vld [vmem:[%s1 + $0x40] sm:$0xff]
      %v269 = vld [vmem:[%s1 + $0x48] sm:$0xff]
      %v270 = vld [vmem:[%s1 + $0x50] sm:$0xff]
      %v271 = vld [vmem:[%s1 + $0x58] sm:$0xff]
      %v272 = vld [vmem:[%s1 + $0x60] sm:$0xff]
      %v273 = vld [vmem:[%s1 + $0x68] sm:$0xff]
      %v274 = vld [vmem:[%s1 + $0x70] sm:$0xff]
      %v275 = vld [vmem:[%s1 + $0x78] sm:$0xff]
      %v276 = vld [vmem:[%s1 + $0x80] sm:$0xff]
      %v277 = vld [vmem:[%s1 + $0x88] sm:$0xff]
      %v278 = vld [vmem:[%s1 + $0x90] sm:$0xff]
      %v279 = vld [vmem:[%s1 + $0x98] sm:$0xff]
      %v280 = vld [vmem:[%s1 + $0xa0] sm:$0xff]
      %v281 = vld [vmem:[%s1 + $0xa8] sm:$0xff]
      %v282 = vld [vmem:[%s1 + $0xb0] sm:$0xff]
      %v283 = vld [vmem:[%s1 + $0xb8] sm:$0xff]
      %v284 = vld [vmem:[%s1 + $0xc0] sm:$0xff]
      %v285 = vld [vmem:[%s1 + $0xc8] sm:$0xff]
      %v286 = vld [vmem:[%s1 + $0xd0] sm:$0xff]
      %v287 = vld [vmem:[%s1 + $0xd8] sm:$0xff]
      %v288 = vld [vmem:[%s1 + $0xe0] sm:$0xff]
      %v289 = vld [vmem:[%s1 + $0xe8] sm:$0xff]
      %v290 = vld [vmem:[%s1 + $0xf0] sm:$0xff]
      %v291 = vld [vmem:[%s1 + $0xf8] sm:$0xff]
      %v292 = vld [vmem:[%s2] sm:$0x3]
      %v294 = vlaneseq
      %v295 = vshrl.u32 %v294, 7
      %v296 = vsub.s32 0, %v295
      %v297 = vrot.slane %v292, %v296
      %v298 = vlaneseq
      %v299 = vshrl.u32 %v298, 7
      %v300 = vsub.s32 1, %v299
      %v301 = vrot.slane %v292, %v300
      %304 = vmatprep.subr.mxu0 %v261
      %305 = vmatpush1.msra.mxu0 %v260
      %306 = vmatprep.subr.mxu0 %v263
      %307 = vmatpush1.msra.mxu0 %v262
      %308 = vmatprep.subr.mxu0 %v265
      %309 = vmatpush1.msra.mxu0 %v264
      %310 = vmatprep.subr.mxu0 %v267
      %311 = vmatpush1.msra.mxu0 %v266
      %312 = vmatprep.subr.mxu0 %v269
      %313 = vmatpush1.msra.mxu0 %v268
      %314 = vmatprep.subr.mxu0 %v271
      %315 = vmatpush1.msra.mxu0 %v270
      %316 = vmatprep.subr.mxu0 %v273
      %317 = vmatpush1.msra.mxu0 %v272
      %318 = vmatprep.subr.mxu0 %v275
      %319 = vmatpush1.msra.mxu0 %v274
      %320 = vmatprep.subr.mxu0 %v277
      %321 = vmatpush1.msra.mxu0 %v276
      %322 = vmatprep.subr.mxu0 %v279
      %323 = vmatpush1.msra.mxu0 %v278
      %324 = vmatprep.subr.mxu0 %v281
      %325 = vmatpush1.msra.mxu0 %v280
      %326 = vmatprep.subr.mxu0 %v283
      %327 = vmatpush1.msra.mxu0 %v282
      %328 = vmatprep.subr.mxu0 %v285
      %329 = vmatpush1.msra.mxu0 %v284
      %330 = vmatprep.subr.mxu0 %v287
      %331 = vmatpush1.msra.mxu0 %v286
      %332 = vmatprep.subr.mxu0 %v289
      %333 = vmatpush1.msra.mxu0 %v288
      %334 = vmatprep.subr.mxu0 %v291
      %335 = vmatpush1.msra.mxu0 %v290
      %336 = vmatprep.subr.mxu0 0.0
      %337 = vmatpush1.msra.mxu0 0.0
      %338 = vmatprep.subr.mxu0 0.0
      %339 = vmatpush1.msra.mxu0 0.0
      %340 = vmatprep.subr.mxu0 0.0
      %341 = vmatpush1.msra.mxu0 0.0
      %342 = vmatprep.subr.mxu0 0.0
      %343 = vmatpush1.msra.mxu0 0.0
      %344 = vmatprep.subr.mxu0 0.0
      %345 = vmatpush1.msra.mxu0 0.0
      %346 = vmatprep.subr.mxu0 0.0
      %347 = vmatpush1.msra.mxu0 0.0
      %348 = vmatprep.subr.mxu0 0.0
      %349 = vmatpush1.msra.mxu0 0.0
      %350 = vmatprep.subr.mxu0 0.0
      %351 = vmatpush1.msra.mxu0 0.0
      %352 = vmatprep.subr.mxu0 0.0
      %353 = vmatpush1.msra.mxu0 0.0
      %354 = vmatprep.subr.mxu0 0.0
      %355 = vmatpush1.msra.mxu0 0.0
      %356 = vmatprep.subr.mxu0 0.0
      %357 = vmatpush1.msra.mxu0 0.0
      %358 = vmatprep.subr.mxu0 0.0
      %359 = vmatpush1.msra.mxu0 0.0
      %360 = vmatprep.subr.mxu0 0.0
      %361 = vmatpush1.msra.mxu0 0.0
      %362 = vmatprep.subr.mxu0 0.0
      %363 = vmatpush1.msra.mxu0 0.0
      %364 = vmatprep.subr.mxu0 0.0
      %365 = vmatpush1.msra.mxu0 0.0
      %366 = vmatprep.subr.mxu0 0.0
      %367 = vmatpush1.msra.mxu0 0.0
      %368 = vmatprep.mubr.f32.mxu0 0.0
      %369 = vmatmul.mubr.f32.gmra.mrb[0].mxu0 %v228
      %v370 = vpop.f32.mrb[0].mxu0
      %v371 = vadd.f32 %v297, %v370
      %v372 = vpop.f32.mrb[0].mxu0
      %v373 = vadd.f32 %v301, %v372
      %374 = vmatprep.mubr.f32.mxu0 0.0
      %375 = vmatmul.mubr.f32.gmra.mrb[0].mxu0 %v229
      %v376 = vpop.f32.mrb[0].mxu0
      %v377 = vadd.f32 %v297, %v376
      %v378 = vpop.f32.mrb[0].mxu0
      %v379 = vadd.f32 %v301, %v378
      %380 = vmatprep.mubr.f32.mxu0 0.0
      %381 = vmatmul.mubr.f32.gmra.mrb[0].mxu0 %v230
      %v382 = vpop.f32.mrb[0].mxu0
      %v383 = vadd.f32 %v297, %v382
      %v384 = vpop.f32.mrb[0].mxu0
      %v385 = vadd.f32 %v301, %v384
      %386 = vmatprep.mubr.f32.mxu0 0.0
      %387 = vmatmul.mubr.f32.gmra.mrb[0].mxu0 %v231
      %v388 = vpop.f32.mrb[0].mxu0
      %v389 = vadd.f32 %v297, %v388
      %v390 = vpop.f32.mrb[0].mxu0
      %v391 = vadd.f32 %v301, %v390
      %392 = vmatprep.mubr.f32.mxu0 0.0
      %393 = vmatmul.mubr.f32.gmra.mrb[0].mxu0 %v232
      %v394 = vpop.f32.mrb[0].mxu0
      %v395 = vadd.f32 %v297, %v394
      %v396 = vpop.f32.mrb[0].mxu0
      %v397 = vadd.f32 %v301, %v396
      %398 = vmatprep.mubr.f32.mxu0 0.0
      %399 = vmatmul.mubr.f32.gmra.mrb[0].mxu0 %v233
      %v400 = vpop.f32.mrb[0].mxu0
      %v401 = vadd.f32 %v297, %v400
      %v402 = vpop.f32.mrb[0].mxu0
      %v403 = vadd.f32 %v301, %v402
      %404 = vmatprep.mubr.f32.mxu0 0.0
      %405 = vmatmul.mubr.f32.gmra.mrb[0].mxu0 %v234
      %v406 = vpop.f32.mrb[0].mxu0
      %v407 = vadd.f32 %v297, %v406
      %v408 = vpop.f32.mrb[0].mxu0
      %v409 = vadd.f32 %v301, %v408
      %410 = vmatprep.mubr.f32.mxu0 0.0
      %411 = vmatmul.mubr.f32.gmra.mrb[0].mxu0 %v235
      %v412 = vpop.f32.mrb[0].mxu0
      %v413 = vadd.f32 %v297, %v412
      %v414 = vpop.f32.mrb[0].mxu0
      %v415 = vadd.f32 %v301, %v414
      %416 = vmatprep.mubr.f32.mxu0 0.0
      %417 = vmatmul.mubr.f32.gmra.mrb[0].mxu0 %v236
      %v418 = vpop.f32.mrb[0].mxu0
      %v419 = vadd.f32 %v297, %v418
      %v420 = vpop.f32.mrb[0].mxu0
      %v421 = vadd.f32 %v301, %v420
      %422 = vmatprep.mubr.f32.mxu0 0.0
      %423 = vmatmul.mubr.f32.gmra.mrb[0].mxu0 %v237
      %v424 = vpop.f32.mrb[0].mxu0
      %v425 = vadd.f32 %v297, %v424
      %v426 = vpop.f32.mrb[0].mxu0
      %v427 = vadd.f32 %v301, %v426
      %428 = vmatprep.mubr.f32.mxu0 0.0
      %429 = vmatmul.mubr.f32.gmra.mrb[0].mxu0 %v238
      %v430 = vpop.f32.mrb[0].mxu0
      %v431 = vadd.f32 %v297, %v430
      %v432 = vpop.f32.mrb[0].mxu0
      %v433 = vadd.f32 %v301, %v432
      %434 = vmatprep.mubr.f32.mxu0 0.0
      %435 = vmatmul.mubr.f32.gmra.mrb[0].mxu0 %v239
      %v436 = vpop.f32.mrb[0].mxu0
      %v437 = vadd.f32 %v297, %v436
      %v438 = vpop.f32.mrb[0].mxu0
      %v439 = vadd.f32 %v301, %v438
      %440 = vmatprep.mubr.f32.mxu0 0.0
      %441 = vmatmul.mubr.f32.gmra.mrb[0].mxu0 %v240
      %v442 = vpop.f32.mrb[0].mxu0
      %v443 = vadd.f32 %v297, %v442
      %v444 = vpop.f32.mrb[0].mxu0
      %v445 = vadd.f32 %v301, %v444
      %446 = vmatprep.mubr.f32.mxu0 0.0
      %447 = vmatmul.mubr.f32.gmra.mrb[0].mxu0 %v241
      %v448 = vpop.f32.mrb[0].mxu0
      %v449 = vadd.f32 %v297, %v448
      %v450 = vpop.f32.mrb[0].mxu0
      %v451 = vadd.f32 %v301, %v450
      %452 = vmatprep.mubr.f32.mxu0 0.0
      %453 = vmatmul.mubr.f32.gmra.mrb[0].mxu0 %v242
      %v454 = vpop.f32.mrb[0].mxu0
      %v455 = vadd.f32 %v297, %v454
      %v456 = vpop.f32.mrb[0].mxu0
      %v457 = vadd.f32 %v301, %v456
      %458 = vmatprep.mubr.f32.mxu0 0.0
      %459 = vmatmul.mubr.f32.gmra.mrb[0].mxu0 %v243
      %v460 = vpop.f32.mrb[0].mxu0
      %v461 = vadd.f32 %v297, %v460
      %v462 = vpop.f32.mrb[0].mxu0
      %v463 = vadd.f32 %v301, %v462
      %464 = vmatprep.mubr.f32.mxu0 0.0
      %465 = vmatmul.mubr.f32.gmra.mrb[0].mxu0 %v244
      %v466 = vpop.f32.mrb[0].mxu0
      %v467 = vadd.f32 %v297, %v466
      %v468 = vpop.f32.mrb[0].mxu0
      %v469 = vadd.f32 %v301, %v468
      %470 = vmatprep.mubr.f32.mxu0 0.0
      %471 = vmatmul.mubr.f32.gmra.mrb[0].mxu0 %v245
      %v472 = vpop.f32.mrb[0].mxu0
      %v473 = vadd.f32 %v297, %v472
      %v474 = vpop.f32.mrb[0].mxu0
      %v475 = vadd.f32 %v301, %v474
      %476 = vmatprep.mubr.f32.mxu0 0.0
      %477 = vmatmul.mubr.f32.gmra.mrb[0].mxu0 %v246
      %v478 = vpop.f32.mrb[0].mxu0
      %v479 = vadd.f32 %v297, %v478
      %v480 = vpop.f32.mrb[0].mxu0
      %v481 = vadd.f32 %v301, %v480
      %482 = vmatprep.mubr.f32.mxu0 0.0
      %483 = vmatmul.mubr.f32.gmra.mrb[0].mxu0 %v247
      %v484 = vpop.f32.mrb[0].mxu0
      %v485 = vadd.f32 %v297, %v484
      %v486 = vpop.f32.mrb[0].mxu0
      %v487 = vadd.f32 %v301, %v486
      %488 = vmatprep.mubr.f32.mxu0 0.0
      %489 = vmatmul.mubr.f32.gmra.mrb[0].mxu0 %v248
      %v490 = vpop.f32.mrb[0].mxu0
      %v491 = vadd.f32 %v297, %v490
      %v492 = vpop.f32.mrb[0].mxu0
      %v493 = vadd.f32 %v301, %v492
      %494 = vmatprep.mubr.f32.mxu0 0.0
      %495 = vmatmul.mubr.f32.gmra.mrb[0].mxu0 %v249
      %v496 = vpop.f32.mrb[0].mxu0
      %v497 = vadd.f32 %v297, %v496
      %v498 = vpop.f32.mrb[0].mxu0
      %v499 = vadd.f32 %v301, %v498
      %500 = vmatprep.mubr.f32.mxu0 0.0
      %501 = vmatmul.mubr.f32.gmra.mrb[0].mxu0 %v250
      %v502 = vpop.f32.mrb[0].mxu0
      %v503 = vadd.f32 %v297, %v502
      %v504 = vpop.f32.mrb[0].mxu0
      %v505 = vadd.f32 %v301, %v504
      %506 = vmatprep.mubr.f32.mxu0 0.0
      %507 = vmatmul.mubr.f32.gmra.mrb[0].mxu0 %v251
      %v508 = vpop.f32.mrb[0].mxu0
      %v509 = vadd.f32 %v297, %v508
      %v510 = vpop.f32.mrb[0].mxu0
      %v511 = vadd.f32 %v301, %v510
      %512 = vmatprep.mubr.f32.mxu0 0.0
      %513 = vmatmul.mubr.f32.gmra.mrb[0].mxu0 %v252
      %v514 = vpop.f32.mrb[0].mxu0
      %v515 = vadd.f32 %v297, %v514
      %v516 = vpop.f32.mrb[0].mxu0
      %v517 = vadd.f32 %v301, %v516
      %518 = vmatprep.mubr.f32.mxu0 0.0
      %519 = vmatmul.mubr.f32.gmra.mrb[0].mxu0 %v253
      %v520 = vpop.f32.mrb[0].mxu0
      %v521 = vadd.f32 %v297, %v520
      %v522 = vpop.f32.mrb[0].mxu0
      %v523 = vadd.f32 %v301, %v522
      %524 = vmatprep.mubr.f32.mxu0 0.0
      %525 = vmatmul.mubr.f32.gmra.mrb[0].mxu0 %v254
      %v526 = vpop.f32.mrb[0].mxu0
      %v527 = vadd.f32 %v297, %v526
      %v528 = vpop.f32.mrb[0].mxu0
      %v529 = vadd.f32 %v301, %v528
      %530 = vmatprep.mubr.f32.mxu0 0.0
      %531 = vmatmul.mubr.f32.gmra.mrb[0].mxu0 %v255
      %v532 = vpop.f32.mrb[0].mxu0
      %v533 = vadd.f32 %v297, %v532
      %v534 = vpop.f32.mrb[0].mxu0
      %v535 = vadd.f32 %v301, %v534
      %536 = vmatprep.mubr.f32.mxu0 0.0
      %537 = vmatmul.mubr.f32.gmra.mrb[0].mxu0 %v256
      %v538 = vpop.f32.mrb[0].mxu0
      %v539 = vadd.f32 %v297, %v538
      %v540 = vpop.f32.mrb[0].mxu0
      %v541 = vadd.f32 %v301, %v540
      %542 = vmatprep.mubr.f32.mxu0 0.0
      %543 = vmatmul.mubr.f32.gmra.mrb[0].mxu0 %v257
      %v544 = vpop.f32.mrb[0].mxu0
      %v545 = vadd.f32 %v297, %v544
      %v546 = vpop.f32.mrb[0].mxu0
      %v547 = vadd.f32 %v301, %v546
      %548 = vmatprep.mubr.f32.mxu0 0.0
      %549 = vmatmul.mubr.f32.gmra.mrb[0].mxu0 %v258
      %v550 = vpop.f32.mrb[0].mxu0
      %v551 = vadd.f32 %v297, %v550
      %v552 = vpop.f32.mrb[0].mxu0
      %v553 = vadd.f32 %v301, %v552
      %554 = vmatprep.mubr.f32.mxu0 0.0
      %555 = vmatmul.mubr.f32.gmra.mrb[0].mxu0 %v259
      %v556 = vpop.f32.mrb[0].mxu0
      %v557 = vadd.f32 %v297, %v556
      %v558 = vpop.f32.mrb[0].mxu0
      %v559 = vadd.f32 %v301, %v558
      %560 = vdwg.mxu0
      %v561 = vmul.f32 %v371, 0.5
      %v562 = vmul.f32 %v373, 0.5
      %v563 = vmul.f32 %v377, 0.5
      %v564 = vmul.f32 %v379, 0.5
      %v565 = vmul.f32 %v383, 0.5
      %v566 = vmul.f32 %v385, 0.5
      %v567 = vmul.f32 %v389, 0.5
      %v568 = vmul.f32 %v391, 0.5
      %v569 = vmul.f32 %v395, 0.5
      %v570 = vmul.f32 %v397, 0.5
      %v571 = vmul.f32 %v401, 0.5
      %v572 = vmul.f32 %v403, 0.5
      %v573 = vmul.f32 %v407, 0.5
      %v574 = vmul.f32 %v409, 0.5
      %v575 = vmul.f32 %v413, 0.5
      %v576 = vmul.f32 %v415, 0.5
      %v577 = vmul.f32 %v419, 0.5
      %v578 = vmul.f32 %v421, 0.5
      %v579 = vmul.f32 %v425, 0.5
      %v580 = vmul.f32 %v427, 0.5
      %v581 = vmul.f32 %v431, 0.5
      %v582 = vmul.f32 %v433, 0.5
      %v583 = vmul.f32 %v437, 0.5
      %v584 = vmul.f32 %v439, 0.5
      %v585 = vmul.f32 %v443, 0.5
      %v586 = vmul.f32 %v445, 0.5
      %v587 = vmul.f32 %v449, 0.5
      %v588 = vmul.f32 %v451, 0.5
      %v589 = vmul.f32 %v455, 0.5
      %v590 = vmul.f32 %v457, 0.5
      %v591 = vmul.f32 %v461, 0.5
      %v592 = vmul.f32 %v463, 0.5
      %v593 = vmul.f32 %v467, 0.5
      %v594 = vmul.f32 %v469, 0.5
      %v595 = vmul.f32 %v473, 0.5
      %v596 = vmul.f32 %v475, 0.5
      %v597 = vmul.f32 %v479, 0.5
      %v598 = vmul.f32 %v481, 0.5
      %v599 = vmul.f32 %v485, 0.5
      %v600 = vmul.f32 %v487, 0.5
      %v601 = vmul.f32 %v491, 0.5
      %v602 = vmul.f32 %v493, 0.5
      %v603 = vmul.f32 %v497, 0.5
      %v604 = vmul.f32 %v499, 0.5
      %v605 = vmul.f32 %v503, 0.5
      %v606 = vmul.f32 %v505, 0.5
      %v607 = vmul.f32 %v509, 0.5
      %v608 = vmul.f32 %v511, 0.5
      %v609 = vmul.f32 %v515, 0.5
      %v610 = vmul.f32 %v517, 0.5
      %v611 = vmul.f32 %v521, 0.5
      %v612 = vmul.f32 %v523, 0.5
      %v613 = vmul.f32 %v527, 0.5
      %v614 = vmul.f32 %v529, 0.5
      %v615 = vmul.f32 %v533, 0.5
      %v616 = vmul.f32 %v535, 0.5
      %v617 = vmul.f32 %v539, 0.5
      %v618 = vmul.f32 %v541, 0.5
      %v619 = vmul.f32 %v545, 0.5
      %v620 = vmul.f32 %v547, 0.5
      %v621 = vmul.f32 %v551, 0.5
      %v622 = vmul.f32 %v553, 0.5
      %v623 = vmul.f32 %v557, 0.5
      %v624 = vmul.f32 %v559, 0.5
      %v625 = vmul.f32 %v371, 0.70710677
      %v626 = vmul.f32 %v373, 0.70710677
      %v627 = vmul.f32 %v377, 0.70710677
      %v628 = vmul.f32 %v379, 0.70710677
      %v629 = vmul.f32 %v383, 0.70710677
      %v630 = vmul.f32 %v385, 0.70710677
      %v631 = vmul.f32 %v389, 0.70710677
      %v632 = vmul.f32 %v391, 0.70710677
      %v633 = vmul.f32 %v395, 0.70710677
      %v634 = vmul.f32 %v397, 0.70710677
      %v635 = vmul.f32 %v401, 0.70710677
      %v636 = vmul.f32 %v403, 0.70710677
      %v637 = vmul.f32 %v407, 0.70710677
      %v638 = vmul.f32 %v409, 0.70710677
      %v639 = vmul.f32 %v413, 0.70710677
      %v640 = vmul.f32 %v415, 0.70710677
      %v641 = vmul.f32 %v419, 0.70710677
      %v642 = vmul.f32 %v421, 0.70710677
      %v643 = vmul.f32 %v425, 0.70710677
      %v644 = vmul.f32 %v427, 0.70710677
      %v645 = vmul.f32 %v431, 0.70710677
      %v646 = vmul.f32 %v433, 0.70710677
      %v647 = vmul.f32 %v437, 0.70710677
      %v648 = vmul.f32 %v439, 0.70710677
      %v649 = vmul.f32 %v443, 0.70710677
      %v650 = vmul.f32 %v445, 0.70710677
      %v651 = vmul.f32 %v449, 0.70710677
      %v652 = vmul.f32 %v451, 0.70710677
      %v653 = vmul.f32 %v455, 0.70710677
      %v654 = vmul.f32 %v457, 0.70710677
      %v655 = vmul.f32 %v461, 0.70710677
      %v656 = vmul.f32 %v463, 0.70710677
      %v657 = vmul.f32 %v467, 0.70710677
      %v658 = vmul.f32 %v469, 0.70710677
      %v659 = vmul.f32 %v473, 0.70710677
      %v660 = vmul.f32 %v475, 0.70710677
      %v661 = vmul.f32 %v479, 0.70710677
      %v662 = vmul.f32 %v481, 0.70710677
      %v663 = vmul.f32 %v485, 0.70710677
      %v664 = vmul.f32 %v487, 0.70710677
      %v665 = vmul.f32 %v491, 0.70710677
      %v666 = vmul.f32 %v493, 0.70710677
      %v667 = vmul.f32 %v497, 0.70710677
      %v668 = vmul.f32 %v499, 0.70710677
      %v669 = vmul.f32 %v503, 0.70710677
      %v670 = vmul.f32 %v505, 0.70710677
      %v671 = vmul.f32 %v509, 0.70710677
      %v672 = vmul.f32 %v511, 0.70710677
      %v673 = vmul.f32 %v515, 0.70710677
      %v674 = vmul.f32 %v517, 0.70710677
      %v675 = vmul.f32 %v521, 0.70710677
      %v676 = vmul.f32 %v523, 0.70710677
      %v677 = vmul.f32 %v527, 0.70710677
      %v678 = vmul.f32 %v529, 0.70710677
      %v679 = vmul.f32 %v533, 0.70710677
      %v680 = vmul.f32 %v535, 0.70710677
      %v681 = vmul.f32 %v539, 0.70710677
      %v682 = vmul.f32 %v541, 0.70710677
      %v683 = vmul.f32 %v545, 0.70710677
      %v684 = vmul.f32 %v547, 0.70710677
      %v685 = vmul.f32 %v551, 0.70710677
      %v686 = vmul.f32 %v553, 0.70710677
      %v687 = vmul.f32 %v557, 0.70710677
      %v688 = vmul.f32 %v559, 0.70710677
      %v689 = verf.f32.pop %v625
      %v690 = verf.f32.pop %v626
      %v691 = verf.f32.pop %v627
      %v692 = verf.f32.pop %v628
      %v693 = verf.f32.pop %v629
      %v694 = verf.f32.pop %v630
      %v695 = verf.f32.pop %v631
      %v696 = verf.f32.pop %v632
      %v697 = verf.f32.pop %v633
      %v698 = verf.f32.pop %v634
      %v699 = verf.f32.pop %v635
      %v700 = verf.f32.pop %v636
      %v701 = verf.f32.pop %v637
      %v702 = verf.f32.pop %v638
      %v703 = verf.f32.pop %v639
      %v704 = verf.f32.pop %v640
      %v705 = verf.f32.pop %v641
      %v706 = verf.f32.pop %v642
      %v707 = verf.f32.pop %v643
      %v708 = verf.f32.pop %v644
      %v709 = verf.f32.pop %v645
      %v710 = verf.f32.pop %v646
      %v711 = verf.f32.pop %v647
      %v712 = verf.f32.pop %v648
      %v713 = verf.f32.pop %v649
      %v714 = verf.f32.pop %v650
      %v715 = verf.f32.pop %v651
      %v716 = verf.f32.pop %v652
      %v717 = verf.f32.pop %v653
      %v718 = verf.f32.pop %v654
      %v719 = verf.f32.pop %v655
      %v720 = verf.f32.pop %v656
      %v721 = verf.f32.pop %v657
      %v722 = verf.f32.pop %v658
      %v723 = verf.f32.pop %v659
      %v724 = verf.f32.pop %v660
      %v725 = verf.f32.pop %v661
      %v726 = verf.f32.pop %v662
      %v727 = verf.f32.pop %v663
      %v728 = verf.f32.pop %v664
      %v729 = verf.f32.pop %v665
      %v730 = verf.f32.pop %v666
      %v731 = verf.f32.pop %v667
      %v732 = verf.f32.pop %v668
      %v733 = verf.f32.pop %v669
      %v734 = verf.f32.pop %v670
      %v735 = verf.f32.pop %v671
      %v736 = verf.f32.pop %v672
      %v737 = verf.f32.pop %v673
      %v738 = verf.f32.pop %v674
      %v739 = verf.f32.pop %v675
      %v740 = verf.f32.pop %v676
      %v741 = verf.f32.pop %v677
      %v742 = verf.f32.pop %v678
      %v743 = verf.f32.pop %v679
      %v744 = verf.f32.pop %v680
      %v745 = verf.f32.pop %v681
      %v746 = verf.f32.pop %v682
      %v747 = verf.f32.pop %v683
      %v748 = verf.f32.pop %v684
      %v749 = verf.f32.pop %v685
      %v750 = verf.f32.pop %v686
      %v751 = verf.f32.pop %v687
      %v752 = verf.f32.pop %v688
      %v753 = vadd.f32 %v689, 1.0
      %v754 = vadd.f32 %v690, 1.0
      %v755 = vadd.f32 %v691, 1.0
      %v756 = vadd.f32 %v692, 1.0
      %v757 = vadd.f32 %v693, 1.0
      %v758 = vadd.f32 %v694, 1.0
      %v759 = vadd.f32 %v695, 1.0
      %v760 = vadd.f32 %v696, 1.0
      %v761 = vadd.f32 %v697, 1.0
      %v762 = vadd.f32 %v698, 1.0
      %v763 = vadd.f32 %v699, 1.0
      %v764 = vadd.f32 %v700, 1.0
      %v765 = vadd.f32 %v701, 1.0
      %v766 = vadd.f32 %v702, 1.0
      %v767 = vadd.f32 %v703, 1.0
      %v768 = vadd.f32 %v704, 1.0
      %v769 = vadd.f32 %v705, 1.0
      %v770 = vadd.f32 %v706, 1.0
      %v771 = vadd.f32 %v707, 1.0
      %v772 = vadd.f32 %v708, 1.0
      %v773 = vadd.f32 %v709, 1.0
      %v774 = vadd.f32 %v710, 1.0
      %v775 = vadd.f32 %v711, 1.0
      %v776 = vadd.f32 %v712, 1.0
      %v777 = vadd.f32 %v713, 1.0
      %v778 = vadd.f32 %v714, 1.0
      %v779 = vadd.f32 %v715, 1.0
      %v780 = vadd.f32 %v716, 1.0
      %v781 = vadd.f32 %v717, 1.0
      %v782 = vadd.f32 %v718, 1.0
      %v783 = vadd.f32 %v719, 1.0
      %v784 = vadd.f32 %v720, 1.0
      %v785 = vadd.f32 %v721, 1.0
      %v786 = vadd.f32 %v722, 1.0
      %v787 = vadd.f32 %v723, 1.0
      %v788 = vadd.f32 %v724, 1.0
      %v789 = vadd.f32 %v725, 1.0
      %v790 = vadd.f32 %v726, 1.0
      %v791 = vadd.f32 %v727, 1.0
      %v792 = vadd.f32 %v728, 1.0
      %v793 = vadd.f32 %v729, 1.0
      %v794 = vadd.f32 %v730, 1.0
      %v795 = vadd.f32 %v731, 1.0
      %v796 = vadd.f32 %v732, 1.0
      %v797 = vadd.f32 %v733, 1.0
      %v798 = vadd.f32 %v734, 1.0
      %v799 = vadd.f32 %v735, 1.0
      %v800 = vadd.f32 %v736, 1.0
      %v801 = vadd.f32 %v737, 1.0
      %v802 = vadd.f32 %v738, 1.0
      %v803 = vadd.f32 %v739, 1.0
      %v804 = vadd.f32 %v740, 1.0
      %v805 = vadd.f32 %v741, 1.0
      %v806 = vadd.f32 %v742, 1.0
      %v807 = vadd.f32 %v743, 1.0
      %v808 = vadd.f32 %v744, 1.0
      %v809 = vadd.f32 %v745, 1.0
      %v810 = vadd.f32 %v746, 1.0
      %v811 = vadd.f32 %v747, 1.0
      %v812 = vadd.f32 %v748, 1.0
      %v813 = vadd.f32 %v749, 1.0
      %v814 = vadd.f32 %v750, 1.0
      %v815 = vadd.f32 %v751, 1.0
      %v816 = vadd.f32 %v752, 1.0
      %v817 = vmul.f32 %v561, %v753
      %v818 = vmul.f32 %v562, %v754
      %v819 = vmul.f32 %v563, %v755
      %v820 = vmul.f32 %v564, %v756
      %v821 = vmul.f32 %v565, %v757
      %v822 = vmul.f32 %v566, %v758
      %v823 = vmul.f32 %v567, %v759
      %v824 = vmul.f32 %v568, %v760
      %v825 = vmul.f32 %v569, %v761
      %v826 = vmul.f32 %v570, %v762
      %v827 = vmul.f32 %v571, %v763
      %v828 = vmul.f32 %v572, %v764
      %v829 = vmul.f32 %v573, %v765
      %v830 = vmul.f32 %v574, %v766
      %v831 = vmul.f32 %v575, %v767
      %v832 = vmul.f32 %v576, %v768
      %v833 = vmul.f32 %v577, %v769
      %v834 = vmul.f32 %v578, %v770
      %v835 = vmul.f32 %v579, %v771
      %v836 = vmul.f32 %v580, %v772
      %v837 = vmul.f32 %v581, %v773
      %v838 = vmul.f32 %v582, %v774
      %v839 = vmul.f32 %v583, %v775
      %v840 = vmul.f32 %v584, %v776
      %v841 = vmul.f32 %v585, %v777
      %v842 = vmul.f32 %v586, %v778
      %v843 = vmul.f32 %v587, %v779
      %v844 = vmul.f32 %v588, %v780
      %v845 = vmul.f32 %v589, %v781
      %v846 = vmul.f32 %v590, %v782
      %v847 = vmul.f32 %v591, %v783
      %v848 = vmul.f32 %v592, %v784
      %v849 = vmul.f32 %v593, %v785
      %v850 = vmul.f32 %v594, %v786
      %v851 = vmul.f32 %v595, %v787
      %v852 = vmul.f32 %v596, %v788
      %v853 = vmul.f32 %v597, %v789
      %v854 = vmul.f32 %v598, %v790
      %v855 = vmul.f32 %v599, %v791
      %v856 = vmul.f32 %v600, %v792
      %v857 = vmul.f32 %v601, %v793
      %v858 = vmul.f32 %v602, %v794
      %v859 = vmul.f32 %v603, %v795
      %v860 = vmul.f32 %v604, %v796
      %v861 = vmul.f32 %v605, %v797
      %v862 = vmul.f32 %v606, %v798
      %v863 = vmul.f32 %v607, %v799
      %v864 = vmul.f32 %v608, %v800
      %v865 = vmul.f32 %v609, %v801
      %v866 = vmul.f32 %v610, %v802
      %v867 = vmul.f32 %v611, %v803
      %v868 = vmul.f32 %v612, %v804
      %v869 = vmul.f32 %v613, %v805
      %v870 = vmul.f32 %v614, %v806
      %v871 = vmul.f32 %v615, %v807
      %v872 = vmul.f32 %v616, %v808
      %v873 = vmul.f32 %v617, %v809
      %v874 = vmul.f32 %v618, %v810
      %v875 = vmul.f32 %v619, %v811
      %v876 = vmul.f32 %v620, %v812
      %v877 = vmul.f32 %v621, %v813
      %v878 = vmul.f32 %v622, %v814
      %v879 = vmul.f32 %v623, %v815
      %v880 = vmul.f32 %v624, %v816
      %v881 = vld [vmem:[%s3] sm:$0xff]
      %v882 = vld [vmem:[%s3 + $0x8] sm:$0xff]
      %v883 = vld [vmem:[%s3 + $0x10] sm:$0xff]
      %v884 = vld [vmem:[%s3 + $0x18] sm:$0xff]
      %v885 = vld [vmem:[%s3 + $0x20] sm:$0xff]
      %v886 = vld [vmem:[%s3 + $0x28] sm:$0xff]
      %v887 = vld [vmem:[%s3 + $0x30] sm:$0xff]
      %v888 = vld [vmem:[%s3 + $0x38] sm:$0xff]
      %v889 = vld [vmem:[%s3 + $0x40] sm:$0xff]
      %v890 = vld [vmem:[%s3 + $0x48] sm:$0xff]
      %v891 = vld [vmem:[%s3 + $0x50] sm:$0xff]
      %v892 = vld [vmem:[%s3 + $0x58] sm:$0xff]
      %v893 = vld [vmem:[%s3 + $0x60] sm:$0xff]
      %v894 = vld [vmem:[%s3 + $0x68] sm:$0xff]
      %v895 = vld [vmem:[%s3 + $0x70] sm:$0xff]
      %v896 = vld [vmem:[%s3 + $0x78] sm:$0xff]
      %v897 = vld [vmem:[%s3 + $0x80] sm:$0xff]
      %v898 = vld [vmem:[%s3 + $0x88] sm:$0xff]
      %v899 = vld [vmem:[%s3 + $0x90] sm:$0xff]
      %v900 = vld [vmem:[%s3 + $0x98] sm:$0xff]
      %v901 = vld [vmem:[%s3 + $0xa0] sm:$0xff]
      %v902 = vld [vmem:[%s3 + $0xa8] sm:$0xff]
      %v903 = vld [vmem:[%s3 + $0xb0] sm:$0xff]
      %v904 = vld [vmem:[%s3 + $0xb8] sm:$0xff]
      %v905 = vld [vmem:[%s3 + $0xc0] sm:$0xff]
      %v906 = vld [vmem:[%s3 + $0xc8] sm:$0xff]
      %v907 = vld [vmem:[%s3 + $0xd0] sm:$0xff]
      %v908 = vld [vmem:[%s3 + $0xd8] sm:$0xff]
      %v909 = vld [vmem:[%s3 + $0xe0] sm:$0xff]
      %v910 = vld [vmem:[%s3 + $0xe8] sm:$0xff]
      %v911 = vld [vmem:[%s3 + $0xf0] sm:$0xff]
      %v912 = vld [vmem:[%s3 + $0xf8] sm:$0xff]
      %v913 = vld [vmem:[%s4] sm:$0x1]
      %v915 = vlaneseq
      %v916 = vshrl.u32 %v915, 7
      %v917 = vsub.s32 0, %v916
      %v918 = vrot.slane %v913, %v917
      %920 = vmatprep.subr.mxu0 0.0
      %921 = vmatpush1.msra.mxu0 %v881
      %922 = vmatprep.subr.mxu0 0.0
      %923 = vmatpush1.msra.mxu0 %v882
      %924 = vmatprep.subr.mxu0 0.0
      %925 = vmatpush1.msra.mxu0 %v883
      %926 = vmatprep.subr.mxu0 0.0
      %927 = vmatpush1.msra.mxu0 %v884
      %928 = vmatprep.subr.mxu0 0.0
      %929 = vmatpush1.msra.mxu0 %v885
      %930 = vmatprep.subr.mxu0 0.0
      %931 = vmatpush1.msra.mxu0 %v886
      %932 = vmatprep.subr.mxu0 0.0
      %933 = vmatpush1.msra.mxu0 %v887
      %934 = vmatprep.subr.mxu0 0.0
      %935 = vmatpush1.msra.mxu0 %v888
      %936 = vmatprep.subr.mxu0 0.0
      %937 = vmatpush1.msra.mxu0 %v889
      %938 = vmatprep.subr.mxu0 0.0
      %939 = vmatpush1.msra.mxu0 %v890
      %940 = vmatprep.subr.mxu0 0.0
      %941 = vmatpush1.msra.mxu0 %v891
      %942 = vmatprep.subr.mxu0 0.0
      %943 = vmatpush1.msra.mxu0 %v892
      %944 = vmatprep.subr.mxu0 0.0
      %945 = vmatpush1.msra.mxu0 %v893
      %946 = vmatprep.subr.mxu0 0.0
      %947 = vmatpush1.msra.mxu0 %v894
      %948 = vmatprep.subr.mxu0 0.0
      %949 = vmatpush1.msra.mxu0 %v895
      %950 = vmatprep.subr.mxu0 0.0
      %951 = vmatpush1.msra.mxu0 %v896
      %952 = vmatprep.subr.mxu0 0.0
      %953 = vmatpush1.msra.mxu0 %v897
      %954 = vmatprep.subr.mxu0 0.0
      %955 = vmatpush1.msra.mxu0 %v898
      %956 = vmatprep.subr.mxu0 0.0
      %957 = vmatpush1.msra.mxu0 %v899
      %958 = vmatprep.subr.mxu0 0.0
      %959 = vmatpush1.msra.mxu0 %v900
      %960 = vmatprep.subr.mxu0 0.0
      %961 = vmatpush1.msra.mxu0 %v901
      %962 = vmatprep.subr.mxu0 0.0
      %963 = vmatpush1.msra.mxu0 %v902
      %964 = vmatprep.subr.mxu0 0.0
      %965 = vmatpush1.msra.mxu0 %v903
      %966 = vmatprep.subr.mxu0 0.0
      %967 = vmatpush1.msra.mxu0 %v904
      %968 = vmatprep.subr.mxu0 0.0
      %969 = vmatpush1.msra.mxu0 %v905
      %970 = vmatprep.subr.mxu0 0.0
      %971 = vmatpush1.msra.mxu0 %v906
      %972 = vmatprep.subr.mxu0 0.0
      %973 = vmatpush1.msra.mxu0 %v907
      %974 = vmatprep.subr.mxu0 0.0
      %975 = vmatpush1.msra.mxu0 %v908
      %976 = vmatprep.subr.mxu0 0.0
      %977 = vmatpush1.msra.mxu0 %v909
      %978 = vmatprep.subr.mxu0 0.0
      %979 = vmatpush1.msra.mxu0 %v910
      %980 = vmatprep.subr.mxu0 0.0
      %981 = vmatpush1.msra.mxu0 %v911
      %982 = vmatprep.subr.mxu0 0.0
      %983 = vmatpush1.msra.mxu0 %v912
      %984 = vmatprep.mubr.f32.mxu0 %v818
      %985 = vmatmul.mubr.f32.gmra.mrb[0].mxu0 %v817
      %v986 = vpop.f32.mrb[0].mxu0
      %v987 = vadd.f32 %v918, %v986
      %v988 = vpop.f32.mrb[0].mxu0
      %989 = vmatprep.mubr.f32.mxu0 %v820
      %990 = vmatmul.mubr.f32.gmra.mrb[0].mxu0 %v819
      %v991 = vpop.f32.mrb[0].mxu0
      %v992 = vadd.f32 %v918, %v991
      %v993 = vpop.f32.mrb[0].mxu0
      %994 = vmatprep.mubr.f32.mxu0 %v822
      %995 = vmatmul.mubr.f32.gmra.mrb[0].mxu0 %v821
      %v996 = vpop.f32.mrb[0].mxu0
      %v997 = vadd.f32 %v918, %v996
      %v998 = vpop.f32.mrb[0].mxu0
      %999 = vmatprep.mubr.f32.mxu0 %v824
      %1000 = vmatmul.mubr.f32.gmra.mrb[0].mxu0 %v823
      %v1001 = vpop.f32.mrb[0].mxu0
      %v1002 = vadd.f32 %v918, %v1001
      %v1003 = vpop.f32.mrb[0].mxu0
      %1004 = vmatprep.mubr.f32.mxu0 %v826
      %1005 = vmatmul.mubr.f32.gmra.mrb[0].mxu0 %v825
      %v1006 = vpop.f32.mrb[0].mxu0
      %v1007 = vadd.f32 %v918, %v1006
      %v1008 = vpop.f32.mrb[0].mxu0
      %1009 = vmatprep.mubr.f32.mxu0 %v828
      %1010 = vmatmul.mubr.f32.gmra.mrb[0].mxu0 %v827
      %v1011 = vpop.f32.mrb[0].mxu0
      %v1012 = vadd.f32 %v918, %v1011
      %v1013 = vpop.f32.mrb[0].mxu0
      %1014 = vmatprep.mubr.f32.mxu0 %v830
      %1015 = vmatmul.mubr.f32.gmra.mrb[0].mxu0 %v829
      %v1016 = vpop.f32.mrb[0].mxu0
      %v1017 = vadd.f32 %v918, %v1016
      %v1018 = vpop.f32.mrb[0].mxu0
      %1019 = vmatprep.mubr.f32.mxu0 %v832
      %1020 = vmatmul.mubr.f32.gmra.mrb[0].mxu0 %v831
      %v1021 = vpop.f32.mrb[0].mxu0
      %v1022 = vadd.f32 %v918, %v1021
      %v1023 = vpop.f32.mrb[0].mxu0
      %1024 = vmatprep.mubr.f32.mxu0 %v834
      %1025 = vmatmul.mubr.f32.gmra.mrb[0].mxu0 %v833
      %v1026 = vpop.f32.mrb[0].mxu0
      %v1027 = vadd.f32 %v918, %v1026
      %v1028 = vpop.f32.mrb[0].mxu0
      %1029 = vmatprep.mubr.f32.mxu0 %v836
      %1030 = vmatmul.mubr.f32.gmra.mrb[0].mxu0 %v835
      %v1031 = vpop.f32.mrb[0].mxu0
      %v1032 = vadd.f32 %v918, %v1031
      %v1033 = vpop.f32.mrb[0].mxu0
      %1034 = vmatprep.mubr.f32.mxu0 %v838
      %1035 = vmatmul.mubr.f32.gmra.mrb[0].mxu0 %v837
      %v1036 = vpop.f32.mrb[0].mxu0
      %v1037 = vadd.f32 %v918, %v1036
      %v1038 = vpop.f32.mrb[0].mxu0
      %1039 = vmatprep.mubr.f32.mxu0 %v840
      %1040 = vmatmul.mubr.f32.gmra.mrb[0].mxu0 %v839
      %v1041 = vpop.f32.mrb[0].mxu0
      %v1042 = vadd.f32 %v918, %v1041
      %v1043 = vpop.f32.mrb[0].mxu0
      %1044 = vmatprep.mubr.f32.mxu0 %v842
      %1045 = vmatmul.mubr.f32.gmra.mrb[0].mxu0 %v841
      %v1046 = vpop.f32.mrb[0].mxu0
      %v1047 = vadd.f32 %v918, %v1046
      %v1048 = vpop.f32.mrb[0].mxu0
      %1049 = vmatprep.mubr.f32.mxu0 %v844
      %1050 = vmatmul.mubr.f32.gmra.mrb[0].mxu0 %v843
      %v1051 = vpop.f32.mrb[0].mxu0
      %v1052 = vadd.f32 %v918, %v1051
      %v1053 = vpop.f32.mrb[0].mxu0
      %1054 = vmatprep.mubr.f32.mxu0 %v846
      %1055 = vmatmul.mubr.f32.gmra.mrb[0].mxu0 %v845
      %v1056 = vpop.f32.mrb[0].mxu0
      %v1057 = vadd.f32 %v918, %v1056
      %v1058 = vpop.f32.mrb[0].mxu0
      %1059 = vmatprep.mubr.f32.mxu0 %v848
      %1060 = vmatmul.mubr.f32.gmra.mrb[0].mxu0 %v847
      %v1061 = vpop.f32.mrb[0].mxu0
      %v1062 = vadd.f32 %v918, %v1061
      %v1063 = vpop.f32.mrb[0].mxu0
      %1064 = vmatprep.mubr.f32.mxu0 %v850
      %1065 = vmatmul.mubr.f32.gmra.mrb[0].mxu0 %v849
      %v1066 = vpop.f32.mrb[0].mxu0
      %v1067 = vadd.f32 %v918, %v1066
      %v1068 = vpop.f32.mrb[0].mxu0
      %1069 = vmatprep.mubr.f32.mxu0 %v852
      %1070 = vmatmul.mubr.f32.gmra.mrb[0].mxu0 %v851
      %v1071 = vpop.f32.mrb[0].mxu0
      %v1072 = vadd.f32 %v918, %v1071
      %v1073 = vpop.f32.mrb[0].mxu0
      %1074 = vmatprep.mubr.f32.mxu0 %v854
      %1075 = vmatmul.mubr.f32.gmra.mrb[0].mxu0 %v853
      %v1076 = vpop.f32.mrb[0].mxu0
      %v1077 = vadd.f32 %v918, %v1076
      %v1078 = vpop.f32.mrb[0].mxu0
      %1079 = vmatprep.mubr.f32.mxu0 %v856
      %1080 = vmatmul.mubr.f32.gmra.mrb[0].mxu0 %v855
      %v1081 = vpop.f32.mrb[0].mxu0
      %v1082 = vadd.f32 %v918, %v1081
      %v1083 = vpop.f32.mrb[0].mxu0
      %1084 = vmatprep.mubr.f32.mxu0 %v858
      %1085 = vmatmul.mubr.f32.gmra.mrb[0].mxu0 %v857
      %v1086 = vpop.f32.mrb[0].mxu0
      %v1087 = vadd.f32 %v918, %v1086
      %v1088 = vpop.f32.mrb[0].mxu0
      %1089 = vmatprep.mubr.f32.mxu0 %v860
      %1090 = vmatmul.mubr.f32.gmra.mrb[0].mxu0 %v859
      %v1091 = vpop.f32.mrb[0].mxu0
      %v1092 = vadd.f32 %v918, %v1091
      %v1093 = vpop.f32.mrb[0].mxu0
      %1094 = vmatprep.mubr.f32.mxu0 %v862
      %1095 = vmatmul.mubr.f32.gmra.mrb[0].mxu0 %v861
      %v1096 = vpop.f32.mrb[0].mxu0
      %v1097 = vadd.f32 %v918, %v1096
      %v1098 = vpop.f32.mrb[0].mxu0
      %1099 = vmatprep.mubr.f32.mxu0 %v864
      %1100 = vmatmul.mubr.f32.gmra.mrb[0].mxu0 %v863
      %v1101 = vpop.f32.mrb[0].mxu0
      %v1102 = vadd.f32 %v918, %v1101
      %v1103 = vpop.f32.mrb[0].mxu0
      %1104 = vmatprep.mubr.f32.mxu0 %v866
      %1105 = vmatmul.mubr.f32.gmra.mrb[0].mxu0 %v865
      %v1106 = vpop.f32.mrb[0].mxu0
      %v1107 = vadd.f32 %v918, %v1106
      %v1108 = vpop.f32.mrb[0].mxu0
      %1109 = vmatprep.mubr.f32.mxu0 %v868
      %1110 = vmatmul.mubr.f32.gmra.mrb[0].mxu0 %v867
      %v1111 = vpop.f32.mrb[0].mxu0
      %v1112 = vadd.f32 %v918, %v1111
      %v1113 = vpop.f32.mrb[0].mxu0
      %1114 = vmatprep.mubr.f32.mxu0 %v870
      %1115 = vmatmul.mubr.f32.gmra.mrb[0].mxu0 %v869
      %v1116 = vpop.f32.mrb[0].mxu0
      %v1117 = vadd.f32 %v918, %v1116
      %v1118 = vpop.f32.mrb[0].mxu0
      %1119 = vmatprep.mubr.f32.mxu0 %v872
      %1120 = vmatmul.mubr.f32.gmra.mrb[0].mxu0 %v871
      %v1121 = vpop.f32.mrb[0].mxu0
      %v1122 = vadd.f32 %v918, %v1121
      %v1123 = vpop.f32.mrb[0].mxu0
      %1124 = vmatprep.mubr.f32.mxu0 %v874
      %1125 = vmatmul.mubr.f32.gmra.mrb[0].mxu0 %v873
      %v1126 = vpop.f32.mrb[0].mxu0
      %v1127 = vadd.f32 %v918, %v1126
      %v1128 = vpop.f32.mrb[0].mxu0
      %1129 = vmatprep.mubr.f32.mxu0 %v876
      %1130 = vmatmul.mubr.f32.gmra.mrb[0].mxu0 %v875
      %v1131 = vpop.f32.mrb[0].mxu0
      %v1132 = vadd.f32 %v918, %v1131
      %v1133 = vpop.f32.mrb[0].mxu0
      %1134 = vmatprep.mubr.f32.mxu0 %v878
      %1135 = vmatmul.mubr.f32.gmra.mrb[0].mxu0 %v877
      %v1136 = vpop.f32.mrb[0].mxu0
      %v1137 = vadd.f32 %v918, %v1136
      %v1138 = vpop.f32.mrb[0].mxu0
      %1139 = vmatprep.mubr.f32.mxu0 %v880
      %1140 = vmatmul.mubr.f32.gmra.mrb[0].mxu0 %v879
      %v1141 = vpop.f32.mrb[0].mxu0
      %v1142 = vadd.f32 %v918, %v1141
      %v1143 = vpop.f32.mrb[0].mxu0
      %1144 = vdwg.mxu0
      %1145 = vst [vmem:[%s226] sm:$0xff] %v987
      %1146 = vst [vmem:[%s226 + $0x8] sm:$0xff] %v992
      %1147 = vst [vmem:[%s226 + $0x10] sm:$0xff] %v997
      %1148 = vst [vmem:[%s226 + $0x18] sm:$0xff] %v1002
      %1149 = vst [vmem:[%s226 + $0x20] sm:$0xff] %v1007
      %1150 = vst [vmem:[%s226 + $0x28] sm:$0xff] %v1012
      %1151 = vst [vmem:[%s226 + $0x30] sm:$0xff] %v1017
      %1152 = vst [vmem:[%s226 + $0x38] sm:$0xff] %v1022
      %1153 = vst [vmem:[%s226 + $0x40] sm:$0xff] %v1027
      %1154 = vst [vmem:[%s226 + $0x48] sm:$0xff] %v1032
      %1155 = vst [vmem:[%s226 + $0x50] sm:$0xff] %v1037
      %1156 = vst [vmem:[%s226 + $0x58] sm:$0xff] %v1042
      %1157 = vst [vmem:[%s226 + $0x60] sm:$0xff] %v1047
      %1158 = vst [vmem:[%s226 + $0x68] sm:$0xff] %v1052
      %1159 = vst [vmem:[%s226 + $0x70] sm:$0xff] %v1057
      %1160 = vst [vmem:[%s226 + $0x78] sm:$0xff] %v1062
      %1161 = vst [vmem:[%s226 + $0x80] sm:$0xff] %v1067
      %1162 = vst [vmem:[%s226 + $0x88] sm:$0xff] %v1072
      %1163 = vst [vmem:[%s226 + $0x90] sm:$0xff] %v1077
      %1164 = vst [vmem:[%s226 + $0x98] sm:$0xff] %v1082
      %1165 = vst [vmem:[%s226 + $0xa0] sm:$0xff] %v1087
      %1166 = vst [vmem:[%s226 + $0xa8] sm:$0xff] %v1092
      %1167 = vst [vmem:[%s226 + $0xb0] sm:$0xff] %v1097
      %1168 = vst [vmem:[%s226 + $0xb8] sm:$0xff] %v1102
      %1169 = vst [vmem:[%s226 + $0xc0] sm:$0xff] %v1107
      %1170 = vst [vmem:[%s226 + $0xc8] sm:$0xff] %v1112
      %1171 = vst [vmem:[%s226 + $0xd0] sm:$0xff] %v1117
      %1172 = vst [vmem:[%s226 + $0xd8] sm:$0xff] %v1122
      %1173 = vst [vmem:[%s226 + $0xe0] sm:$0xff] %v1127
      %1174 = vst [vmem:[%s226 + $0xe8] sm:$0xff] %v1132
      %1175 = vst [vmem:[%s226 + $0xf0] sm:$0xff] %v1137
      %1176 = vst [vmem:[%s226 + $0xf8] sm:$0xff] %v1142
      %s1177 = smul.u32 32, %s16
      %p1178 = scmp.lt.s32.totalorder %s1177, 63
      %s1179 = scalar_select %p1178, %s1177, 63
      %s1180 = smul.addr %s1179, 8
      %s1181 = scalar_lea.vmem %s5, %s1180
      // Predicated region
      $region41: #{mlp_forward.1} parent=39 // pred_check
        %p1182 = pneg %p144
      $region42: #{mlp_forward.1} parent=39 // pred_check_branch
        %1184 = sbr.rel (%p1182) target = $region44
      $region43: #{mlp_forward.1} parent=39 // pred_region
        %s1185 = smul.u32 32, %s16
      $region44: #{mlp_forward.1} parent=39 // pred_fallthru
        _
    $region40: #{mlp_forward.1} parent=5 // pred_fallthru
      _
    %p1186 = scmp.le.s32.totalorder 2, %s11
    // Predicated region
    $region45: #{mlp_forward.1} parent=5 // pred_check
      %p1187 = pneg %p1186
    $region46: #{mlp_forward.1} parent=5 // pred_check_branch
      %1189 = sbr.rel (%p1187) target = $region48
    $region47: #{mlp_forward.1} parent=5 // pred_region
      %s1190 = ssub.s32 %s11, 2
      // Predicated region
      $region49: #{mlp_forward.1} parent=47 // pred_check
        %p1191 = pneg %p150
      $region50: #{mlp_forward.1} parent=47 // pred_check_branch
        %1193 = sbr.rel (%p1191) target = $region52
      $region51: #{mlp_forward.1} parent=47 // pred_region
        %s1194 = smul.u32 32, %s17
        %p1195 = scmp.lt.s32.totalorder %s1194, 63
        %s1196 = scalar_select %p1195, %s1194, 63
        %s1197 = smul.addr %s1196, 8
        %s1198 = scalar_lea.vmem %s5, %s1197
      $region52: #{mlp_forward.1} parent=47 // pred_fallthru
        _
    $region48: #{mlp_forward.1} parent=5 // pred_fallthru
      _
  $region6: #{mlp_forward.1} parent=0 // loop_footer
    %s15 = sadd.s32 1, %s11
  $region7: #{mlp_forward.1} parent=0 // loop_footer_branch
    %10 = sbr.rel target = $region3
  $region8: #{mlp_forward.1} parent=0 // loop_exit
    _

</llo_original>
